<compile_context>
chip_gen: v7x
topology: tpu7x:2x2x1
jax: 0.10.0
libtpu: 0.0.40
codegen_flags: <defaults>
</compile_context>

<pallas_src>
import functools

import jax
import jax.numpy as jnp
from jax import lax
from jax.experimental import pallas as pl
from jax.experimental.pallas import tpu as pltpu

_LANE = 128


def _tpu_caps():
    """(vmem_limit_bytes, max lane-tile) per TPU generation."""
    try:
        kind = jax.devices()[0].device_kind.lower()
    except Exception:
        kind = ""
    if "v7" in kind:
        # 64 MiB physical VMEM: 48 MiB scoped keeps pass-2 double-buffering intact.
        return 48 * 1024 * 1024, 8192
    if "v6" in kind:
        return 96 * 1024 * 1024, 8192
    if "v5" in kind:
        # slower HBM: ~4 MiB-class blocks already reach the roofline.
        return 64 * 1024 * 1024, 4096
    # unknown / older generations: stay conservative.
    return 32 * 1024 * 1024, 2048


def _choose_tiles(C, HW, itemsize, vmem_limit, hw_global_cap, c_cap=256):
    """Pick (c_tile, hw_tile).  Blocks never exceed ~1/4 of (0.75 * vmem_limit)."""
    sublane = 8 if itemsize >= 4 else 16
    if C <= c_cap:
        c_tile = C                      # full dim is always a legal block extent
    else:
        c_tile = (c_cap // sublane) * sublane
    if HW < _LANE:
        hw_tile = HW                    # full dim (narrow-lane fallback, see TODO)
    else:
        per_block = int(vmem_limit * 0.75) // 4   # in+out, double-buffered
        hw_budget = max(_LANE, (per_block // max(c_tile * itemsize, 1)) // _LANE * _LANE)
        hw_tile = max(_LANE, min((HW // _LANE) * _LANE, hw_global_cap, hw_budget))
    return c_tile, hw_tile


def _stats_kernel(x_ref, sum_ref, sq_ref, *, hw_tile, hw_total, acc_w,
                  lane_chunks, need_mask):
    # x_ref: (1, C_tile, HW_tile); sum_ref/sq_ref: (1, C_tile, acc_w) resident f32.
    m = pl.program_id(2)

    @pl.when(m == 0)
    def _():
        sum_ref[...] = jnp.zeros_like(sum_ref)
        sq_ref[...] = jnp.zeros_like(sq_ref)

    c_tile = sum_ref.shape[1]
    s_acc = jnp.zeros((c_tile, acc_w), jnp.float32)
    q_acc = jnp.zeros((c_tile, acc_w), jnp.float32)
    if need_mask:
        lane_ids = lax.broadcasted_iota(jnp.int32, (c_tile, acc_w), 1)
        base = m * hw_tile
    # Lane-resident accumulation: pure VPU adds, no per-step cross-lane (XLU) reduce.
    for k in range(lane_chunks):
        chunk = x_ref[0, :, k * acc_w:(k + 1) * acc_w].astype(jnp.float32)
        if need_mask:
            chunk = jnp.where(base + k * acc_w + lane_ids < hw_total, chunk, 0.0)
        s_acc = s_acc + chunk
        q_acc = q_acc + chunk * chunk
    sum_ref[0] += s_acc
    sq_ref[0] += q_acc


def _normalize_kernel(x_ref, scale_ref, shift_ref, o_ref, *, activation, slope):
    # x_ref/o_ref: (1, C_tile, HW_tile); scale/shift: (C_tile, 1) f32.
    y = x_ref[0].astype(jnp.float32) * scale_ref[...] + shift_ref[...]
    if activation == "leaky_relu":
        if 0.0 <= slope <= 1.0:
            y = jnp.maximum(y, slope * y)
        else:
            y = jnp.where(y >= 0, y, slope * y)
    elif activation == "elu":
        y = jnp.where(y > 0, y, jnp.expm1(y))
    elif activation == "none":
        pass
    else:
        raise NotImplementedError(f"activation {activation!r} not implemented")
    o_ref[0] = y.astype(o_ref.dtype)


def inplace_abn_forward(x_nchw, weight, bias, running_mean, running_var, *,
                        training=True, momentum=0.1, eps=1e-5,
                        activation="leaky_relu", slope=0.01):
    """Forward of InPlaceABN (training mode).

    Returns (output NCHW, new_running_mean, new_running_var).
    For the output to truly reuse x's HBM buffer, wrap the call in
    jax.jit(..., donate_argnums=0).
    """
    assert training, "kernel implements training-mode (batch-stat) semantics"
    N, C, H, W = x_nchw.shape
    HW = H * W
    M = N * HW

    # Contiguity-preserving reshape: no transpose, no extra HBM pass.
    x = x_nchw.reshape(N, C, HW)
    itemsize = jnp.dtype(x.dtype).itemsize

    vmem_limit, hw_global_cap = _tpu_caps()
    c_tile, hw_tile = _choose_tiles(C, HW, itemsize, vmem_limit, hw_global_cap)
    c_steps = pl.cdiv(C, c_tile)
    hw_steps = pl.cdiv(HW, hw_tile)

    acc_w = _LANE if hw_tile >= _LANE else hw_tile
    lane_chunks = hw_tile // acc_w
    need_mask = (HW % hw_tile) != 0   # only the HW tail needs masking in pass 1

    # ------------- pass 1: per-(n, channel) lane-resident sum / sum-of-squares -------------
    stats_kernel = functools.partial(
        _stats_kernel, hw_tile=hw_tile, hw_total=HW, acc_w=acc_w,
        lane_chunks=lane_chunks, need_mask=need_mask)
    sums3, sq3 = pl.pallas_call(
        stats_kernel,
        out_shape=(jax.ShapeDtypeStruct((N, C, acc_w), jnp.float32),
                   jax.ShapeDtypeStruct((N, C, acc_w), jnp.float32)),
        grid=(c_steps, N, hw_steps),                 # reduction axis (HW) last
        in_specs=[pl.BlockSpec((1, c_tile, hw_tile), lambda c, n, m: (n, c, m))],
        out_specs=(pl.BlockSpec((1, c_tile, acc_w), lambda c, n, m: (n, c, 0)),
                   pl.BlockSpec((1, c_tile, acc_w), lambda c, n, m: (n, c, 0))),
        compiler_params=pltpu.CompilerParams(
            dimension_semantics=("parallel", "parallel", "arbitrary"),
            vmem_limit_bytes=vmem_limit),
    )(x)

    # ------------- tiny C-sized glue: stats, scale/shift, running stats -------------
    sums = jnp.sum(sums3, axis=(0, 2))                      # (C,) f32
    sumsq = jnp.sum(sq3, axis=(0, 2))
    inv_m = 1.0 / M
    mean = sums * inv_m
    var = jnp.maximum(sumsq * inv_m - mean * mean, 0.0)      # biased var, cancellation guard
    inv_std = lax.rsqrt(var + eps)
    gamma = weight.astype(jnp.float32)
    beta = bias.astype(jnp.float32)
    scale = gamma * inv_std                                  # (C,)
    shift = beta - mean * scale                              # (C,)
    scale2 = scale.reshape(C, 1)
    shift2 = shift.reshape(C, 1)

    # TODO(synk): PyTorch yields inf/NaN for M == 1 (unbiased var); we clamp instead.
    unbias = M / max(M - 1, 1)
    new_rm = ((1.0 - momentum) * running_mean.astype(jnp.float32)
              + momentum * mean).astype(running_mean.dtype)
    new_rv = ((1.0 - momentum) * running_var.astype(jnp.float32)
              + momentum * (var * unbias)).astype(running_var.dtype)

    # ------------- pass 2: normalize + activation (aliased onto x) -------------
    out = pl.pallas_call(
        functools.partial(_normalize_kernel, activation=activation, slope=float(slope)),
        out_shape=jax.ShapeDtypeStruct((N, C, HW), x.dtype),
        grid=(c_steps, N, hw_steps),
        in_specs=[pl.BlockSpec((1, c_tile, hw_tile), lambda c, n, m: (n, c, m)),
                  pl.BlockSpec((c_tile, 1), lambda c, n, m: (c, 0)),
                  pl.BlockSpec((c_tile, 1), lambda c, n, m: (c, 0))],
        out_specs=pl.BlockSpec((1, c_tile, hw_tile), lambda c, n, m: (n, c, m)),
        input_output_aliases={0: 0},                         # honored when x is donated
        compiler_params=pltpu.CompilerParams(
            dimension_semantics=("parallel", "parallel", "parallel"),
            vmem_limit_bytes=vmem_limit),
    )(x, scale2, shift2)

    return out.reshape(N, C, H, W), new_rm, new_rv


def _reference(x, weight, bias, eps, slope):
    xf = x.astype(jnp.float32)
    mean = jnp.mean(xf, axis=(0, 2, 3), keepdims=True)
    var = jnp.mean((xf - mean) ** 2, axis=(0, 2, 3), keepdims=True)
    y = (xf - mean) / jnp.sqrt(var + eps)
    y = y * weight.reshape(1, -1, 1, 1) + bias.reshape(1, -1, 1, 1)
    return jnp.where(y >= 0, y, slope * y).astype(x.dtype)


if __name__ == "__main__":
    key = jax.random.PRNGKey(0)
    N, C, H, W = 2, 4, 16, 16
    momentum, eps, slope = 0.1, 1e-5, 0.01

    x = jax.random.normal(key, (N, C, H, W), dtype=jnp.float32) * 1.5 + 0.3

    # Deterministic parameter init matching ABN.reset_parameters():
    weight = jnp.ones((C,), dtype=jnp.float32)
    bias = jnp.zeros((C,), dtype=jnp.float32)
    running_mean = jnp.zeros((C,), dtype=jnp.float32)
    running_var = jnp.ones((C,), dtype=jnp.float32)

    # References are computed BEFORE the jitted call because x is donated below.
    ref = _reference(x, weight, bias, eps, slope)
    xf = x.astype(jnp.float32)
    b_mean = jnp.mean(xf, axis=(0, 2, 3))
    b_var = jnp.mean((xf - b_mean.reshape(1, -1, 1, 1)) ** 2, axis=(0, 2, 3))
    M = N * H * W
    exp_rm = (1 - momentum) * running_mean + momentum * b_mean
    exp_rv = (1 - momentum) * running_var + momentum * b_var * (M / (M - 1))
    jax.block_until_ready((ref, exp_rm, exp_rv))

    # donate_argnums=0 makes the input_output_aliases real (no defensive copy of x).
    fwd = jax.jit(functools.partial(
        inplace_abn_forward, training=True, momentum=momentum, eps=eps,
        activation="leaky_relu", slope=slope), donate_argnums=0)

    out, new_rm, new_rv = fwd(x, weight, bias, running_mean, running_var)
    jax.block_until_ready((out, new_rm, new_rv))
    # NOTE: x has been donated; do not touch it past this point.

    assert jnp.allclose(out, ref, atol=1e-4, rtol=1e-4), "output mismatch vs reference"
    assert jnp.allclose(new_rm, exp_rm, atol=1e-4, rtol=1e-4), "running_mean mismatch"
    assert jnp.allclose(new_rv, exp_rv, atol=1e-4, rtol=1e-4), "running_var mismatch"

    print("KERNEL_OK")
</pallas_src>

<mosaic_0001>
module attributes {stable_mosaic.version = 11 : i64} {
  func.func @_stats_kernel(%arg0: i32, %arg1: i32, %arg2: i32, %arg3: memref<1x4x256xf32, #tpu.memory_space<vmem>>, %arg4: memref<1x4x128xf32, #tpu.memory_space<vmem>>, %arg5: memref<1x4x128xf32, #tpu.memory_space<vmem>>) attributes {dimension_semantics = [#tpu.dimension_semantics<parallel>, #tpu.dimension_semantics<parallel>, #tpu.dimension_semantics<arbitrary>], iteration_bounds = array<i64: 1, 2, 1>, scalar_prefetch = 0 : i64, scratch_operands = 0 : i64, tpu.core_type = #tpu.core_type<tc>, window_params = [{transform_indices = @transform_0, window_bounds = array<i64: 1, 4, 256>}, {transform_indices = @transform_1, window_bounds = array<i64: 1, 4, 128>}, {transform_indices = @transform_2, window_bounds = array<i64: 1, 4, 128>}]} {
    %c0_i32 = arith.constant 0 : i32
    %0 = arith.cmpi eq, %arg2, %c0_i32 : i32
    %1 = arith.extui %0 : i1 to i32
    %c0_i32_0 = arith.constant 0 : i32
    %2 = arith.cmpi ne, %1, %c0_i32_0 : i32
    scf.if %2 {
      %cst_18 = arith.constant 0.000000e+00 : f32
      %27 = vector.broadcast %cst_18 : f32 to vector<1x4x128xf32>
      %c0_19 = arith.constant 0 : index
      %c0_20 = arith.constant 0 : index
      %c0_21 = arith.constant 0 : index
      %28 = vector.load %arg4[%c0_19, %c0_20, %c0_21] : memref<1x4x128xf32, #tpu.memory_space<vmem>>, vector<1x4x128xf32>
      tpu.vector_store %arg4[%c0_19, %c0_20, %c0_21], %27 {strides = array<i32>} : memref<1x4x128xf32, #tpu.memory_space<vmem>>, vector<1x4x128xf32>,
      %cst_22 = arith.constant 0.000000e+00 : f32
      %29 = vector.broadcast %cst_22 : f32 to vector<1x4x128xf32>
      %c0_23 = arith.constant 0 : index
      %c0_24 = arith.constant 0 : index
      %c0_25 = arith.constant 0 : index
      %30 = vector.load %arg5[%c0_23, %c0_24, %c0_25] : memref<1x4x128xf32, #tpu.memory_space<vmem>>, vector<1x4x128xf32>
      tpu.vector_store %arg5[%c0_23, %c0_24, %c0_25], %29 {strides = array<i32>} : memref<1x4x128xf32, #tpu.memory_space<vmem>>, vector<1x4x128xf32>,
    } else {
    }
    %cst = arith.constant 0.000000e+00 : f32
    %3 = vector.broadcast %cst : f32 to vector<4x128xf32>
    %cst_1 = arith.constant 0.000000e+00 : f32
    %4 = vector.broadcast %cst_1 : f32 to vector<4x128xf32>
    %c0 = arith.constant 0 : index
    %c0_2 = arith.constant 0 : index
    %c0_3 = arith.constant 0 : index
    %5 = vector.load %arg3[%c0, %c0_2, %c0_3] : memref<1x4x256xf32, #tpu.memory_space<vmem>>, vector<1x4x128xf32>
    %6 = vector.shape_cast %5 : vector<1x4x128xf32> to vector<4x128xf32>
    %7 = arith.addf %3, %6 : vector<4x128xf32>
    %8 = arith.mulf %6, %6 : vector<4x128xf32>
    %9 = arith.addf %4, %8 : vector<4x128xf32>
    %c0_4 = arith.constant 0 : index
    %c0_5 = arith.constant 0 : index
    %c128 = arith.constant 128 : index
    %10 = vector.load %arg3[%c0_4, %c0_5, %c128] : memref<1x4x256xf32, #tpu.memory_space<vmem>>, vector<1x4x128xf32>
    %11 = vector.shape_cast %10 : vector<1x4x128xf32> to vector<4x128xf32>
    %12 = arith.addf %7, %11 : vector<4x128xf32>
    %13 = arith.mulf %11, %11 : vector<4x128xf32>
    %14 = arith.addf %9, %13 : vector<4x128xf32>
    %c0_6 = arith.constant 0 : index
    %c0_7 = arith.constant 0 : index
    %c0_8 = arith.constant 0 : index
    %15 = vector.load %arg4[%c0_6, %c0_7, %c0_8] : memref<1x4x128xf32, #tpu.memory_space<vmem>>, vector<1x4x128xf32>
    %16 = vector.shape_cast %15 : vector<1x4x128xf32> to vector<4x128xf32>
    %17 = arith.addf %16, %12 : vector<4x128xf32>
    %c0_9 = arith.constant 0 : index
    %c0_10 = arith.constant 0 : index
    %c0_11 = arith.constant 0 : index
    %18 = vector.load %arg4[%c0_9, %c0_10, %c0_11] : memref<1x4x128xf32, #tpu.memory_space<vmem>>, vector<1x4x128xf32>
    %19 = vector.shape_cast %18 : vector<1x4x128xf32> to vector<4x128xf32>
    %20 = vector.shape_cast %17 : vector<4x128xf32> to vector<1x4x128xf32>
    tpu.vector_store %arg4[%c0_9, %c0_10, %c0_11], %20 {strides = array<i32>} : memref<1x4x128xf32, #tpu.memory_space<vmem>>, vector<1x4x128xf32>,
    %c0_12 = arith.constant 0 : index
    %c0_13 = arith.constant 0 : index
    %c0_14 = arith.constant 0 : index
    %21 = vector.load %arg5[%c0_12, %c0_13, %c0_14] : memref<1x4x128xf32, #tpu.memory_space<vmem>>, vector<1x4x128xf32>
    %22 = vector.shape_cast %21 : vector<1x4x128xf32> to vector<4x128xf32>
    %23 = arith.addf %22, %14 : vector<4x128xf32>
    %c0_15 = arith.constant 0 : index
    %c0_16 = arith.constant 0 : index
    %c0_17 = arith.constant 0 : index
    %24 = vector.load %arg5[%c0_15, %c0_16, %c0_17] : memref<1x4x128xf32, #tpu.memory_space<vmem>>, vector<1x4x128xf32>
    %25 = vector.shape_cast %24 : vector<1x4x128xf32> to vector<4x128xf32>
    %26 = vector.shape_cast %23 : vector<4x128xf32> to vector<1x4x128xf32>
    tpu.vector_store %arg5[%c0_15, %c0_16, %c0_17], %26 {strides = array<i32>} : memref<1x4x128xf32, #tpu.memory_space<vmem>>, vector<1x4x128xf32>,
    return
  }
  func.func @transform_0(%arg0: i32, %arg1: i32, %arg2: i32) -> (i32, i32, i32) {
    %c0_i32 = arith.constant 0 : i32
    return %arg1, %arg0, %arg2 : i32, i32, i32
  }
  func.func @transform_1(%arg0: i32, %arg1: i32, %arg2: i32) -> (i32, i32, i32) {
    %c0_i32 = arith.constant 0 : i32
    %c0_i32_0 = arith.constant 0 : i32
    return %arg1, %arg0, %c0_i32 : i32, i32, i32
  }
  func.func @transform_2(%arg0: i32, %arg1: i32, %arg2: i32) -> (i32, i32, i32) {
    %c0_i32 = arith.constant 0 : i32
    %c0_i32_0 = arith.constant 0 : i32
    return %arg1, %arg0, %c0_i32 : i32, i32, i32
  }
}

module attributes {stable_mosaic.version = 11 : i64} {
  func.func @_normalize_kernel(%arg0: i32, %arg1: i32, %arg2: i32, %arg3: memref<1x4x256xf32, #tpu.memory_space<vmem>>, %arg4: memref<4x1xf32, #tpu.memory_space<vmem>>, %arg5: memref<4x1xf32, #tpu.memory_space<vmem>>, %arg6: memref<1x4x256xf32, #tpu.memory_space<vmem>>) attributes {dimension_semantics = [#tpu.dimension_semantics<parallel>, #tpu.dimension_semantics<parallel>, #tpu.dimension_semantics<parallel>], iteration_bounds = array<i64: 1, 2, 1>, scalar_prefetch = 0 : i64, scratch_operands = 0 : i64, tpu.core_type = #tpu.core_type<tc>, window_params = [{transform_indices = @transform_0, window_bounds = array<i64: 1, 4, 256>}, {transform_indices = @transform_1, window_bounds = array<i64: 4, 1>}, {transform_indices = @transform_2, window_bounds = array<i64: 4, 1>}, {transform_indices = @transform_3, window_bounds = array<i64: 1, 4, 256>}]} {
    %c0 = arith.constant 0 : index
    %c0_0 = arith.constant 0 : index
    %c0_1 = arith.constant 0 : index
    %0 = vector.load %arg3[%c0, %c0_0, %c0_1] : memref<1x4x256xf32, #tpu.memory_space<vmem>>, vector<1x4x256xf32>
    %1 = vector.shape_cast %0 : vector<1x4x256xf32> to vector<4x256xf32>
    %c0_2 = arith.constant 0 : index
    %c0_3 = arith.constant 0 : index
    %2 = vector.load %arg4[%c0_2, %c0_3] : memref<4x1xf32, #tpu.memory_space<vmem>>, vector<4x1xf32>
    %3 = vector.broadcast %2 : vector<4x1xf32> to vector<4x256xf32>
    %4 = arith.mulf %1, %3 : vector<4x256xf32>
    %c0_4 = arith.constant 0 : index
    %c0_5 = arith.constant 0 : index
    %5 = vector.load %arg5[%c0_4, %c0_5] : memref<4x1xf32, #tpu.memory_space<vmem>>, vector<4x1xf32>
    %6 = vector.broadcast %5 : vector<4x1xf32> to vector<4x256xf32>
    %7 = arith.addf %4, %6 : vector<4x256xf32>
    %cst = arith.constant 0.00999999977 : f32
    %8 = vector.broadcast %cst : f32 to vector<4x256xf32>
    %9 = arith.mulf %8, %7 : vector<4x256xf32>
    %10 = arith.maximumf %7, %9 : vector<4x256xf32>
    %c0_6 = arith.constant 0 : index
    %c0_7 = arith.constant 0 : index
    %c0_8 = arith.constant 0 : index
    %11 = vector.load %arg6[%c0_6, %c0_7, %c0_8] : memref<1x4x256xf32, #tpu.memory_space<vmem>>, vector<1x4x256xf32>
    %12 = vector.shape_cast %11 : vector<1x4x256xf32> to vector<4x256xf32>
    %13 = vector.shape_cast %10 : vector<4x256xf32> to vector<1x4x256xf32>
    tpu.vector_store %arg6[%c0_6, %c0_7, %c0_8], %13 {strides = array<i32>} : memref<1x4x256xf32, #tpu.memory_space<vmem>>, vector<1x4x256xf32>,
    return
  }
  func.func @transform_0(%arg0: i32, %arg1: i32, %arg2: i32) -> (i32, i32, i32) {
    %c0_i32 = arith.constant 0 : i32
    return %arg1, %arg0, %arg2 : i32, i32, i32
  }
  func.func @transform_1(%arg0: i32, %arg1: i32, %arg2: i32) -> (i32, i32) {
    %c0_i32 = arith.constant 0 : i32
    %c0_i32_0 = arith.constant 0 : i32
    return %arg0, %c0_i32 : i32, i32
  }
  func.func @transform_2(%arg0: i32, %arg1: i32, %arg2: i32) -> (i32, i32) {
    %c0_i32 = arith.constant 0 : i32
    %c0_i32_0 = arith.constant 0 : i32
    return %arg0, %c0_i32 : i32, i32
  }
  func.func @transform_3(%arg0: i32, %arg1: i32, %arg2: i32) -> (i32, i32, i32) {
    %c0_i32 = arith.constant 0 : i32
    return %arg1, %arg0, %arg2 : i32, i32, i32
  }
}

</mosaic_0001>

<llo_original>
// kernel: inplace_abn_forward.2
$region0: #{inplace_abn_forward.2}
  #allocation0 [shape = 'u32[]', space=smem, size = 0x4, offset = 0x4, fixed_abs, tag = 'smem constant byte address 0x4 - core index']
  #allocation1 [shape = 'u32[144,128]{1,0:T(1,128)}', space=vmem, size = 0x12000, scoped, tag = 'internal scratch']
  %s0 = inlined_call_operand.vmem [shape: f32[2,4,256], index: 0, kind: input, shape index: {}]
  %s1 = inlined_call_operand.vmem [shape: f32[2,4,128], index: 1, kind: output, shape index: {0}]
  %s2 = inlined_call_operand.vmem [shape: f32[2,4,128], index: 2, kind: output, shape index: {1}]
  %3 = xla_tuple %s1, %s2
  %s4 = sld [smem:[#allocation0]]
  $region49: #{inplace_abn_forward.2} parent=0
    _
  %s6 = ssub.s32 1, %s4
  %s7 = scalar_select 0, %s6, %s4
  loop: start=0, step=1, limit=4
  $region2: #{inplace_abn_forward.2} parent=0 // loop_pre_header
    _
  $region3: #{inplace_abn_forward.2} parent=0 // loop_header
    %s9 = sphi 0, %s13
    %p10 = scmp.ge.s32.totalorder %s9, 4
    %s16 = sphi 0, %s35
    %s17 = sphi 0, %s31
    %s18 = sphi 0, %s27
    %s19 = sphi 0, %s16
    %s20 = sphi 0, %s17
    %s21 = sphi 0, %s18
    %s22 = sphi 0, %s19
    %s23 = sphi 0, %s20
    %s24 = sphi 0, %s21
    %s42 = sphi 0, %s44
    %s45 = sphi 0, %s42
    %s46 = sphi 0, %s45
    %s62 = sphi 0, %s46
    %s70 = sphi 0, %s72
    %s73 = sphi 0, %s70
    %s74 = sphi 0, %s73
    %s90 = sphi 0, %s74
    %s98 = sphi 0, %s100
    %s101 = sphi 0, %s98
    %s102 = sphi 0, %s101
    %s118 = sphi 0, %s102
  $region4: #{inplace_abn_forward.2} parent=0 // loop_header_branch
    %12 = sbr.rel (%p10) target = $region8
  $region5: #{inplace_abn_forward.2} parent=0 // loop_body
    %s14 = ssub.s32 %s9, 1
    %s15 = ssub.s32 %s9, 2
    %s25 = sadd.s32 1, %s18
    %p26 = scmp.ge.s32.totalorder %s25, 1
    %s27 = scalar_select %p26, 0, %s25
    %s28 = sadd.s32 1, %s17
    %s29 = scalar_select %p26, %s28, %s17
    %p30 = scmp.ge.s32.totalorder %s29, 2
    %s31 = scalar_select %p30, 0, %s29
    %s32 = sadd.s32 1, %s16
    %s33 = scalar_select %p30, %s32, %s16
    %p34 = scmp.ge.s32.totalorder %s33, 1
    %s35 = scalar_select %p34, 0, %s33
    %s36 = ssub.s32 %s17, %s31
    %s37 = ssub.s32 %s16, %s35
    %s38 = sor.u32 %s36, %s37
    %s39 = ssub.s32 %s18, %s27
    %s40 = sor.u32 %s38, %s39
    %p41 = scmp.eq.s32.totalorder %s40, 0
    %s43 = sadd.s32 %s42, 1
    %s44 = scalar_select %p41, %s42, %s43
    %p47 = pneg %p41
    %p48 = scmp.eq.s32.totalorder %s9, 1
    %p49 = por %p47, %p48
    %p50 = scmp.ne.s32.totalorder %s42, %s45
    %p51 = scmp.eq.s32.totalorder %s9, 0
    %p52 = por %p50, %p51
    %p53 = scmp.ne.s32.totalorder %s42, %s45
    %p54 = scmp.eq.s32.totalorder %s14, 1
    %p55 = por %p53, %p54
    %p56 = scmp.ne.s32.totalorder %s45, %s46
    %p57 = scmp.eq.s32.totalorder %s14, 0
    %p58 = por %p56, %p57
    %p59 = scmp.ne.s32.totalorder %s45, %s46
    %p60 = scmp.eq.s32.totalorder %s15, 1
    %p61 = por %p59, %p60
    %p63 = scmp.ne.s32.totalorder %s46, %s62
    %p64 = scmp.eq.s32.totalorder %s15, 0
    %p65 = por %p63, %p64
    %s66 = ssub.s32 %s17, %s31
    %s67 = ssub.s32 %s16, %s35
    %s68 = sor.u32 %s66, %s67
    %p69 = scmp.eq.s32.totalorder %s68, 0
    %s71 = sadd.s32 %s70, 1
    %s72 = scalar_select %p69, %s70, %s71
    %p75 = pneg %p69
    %p76 = scmp.eq.s32.totalorder %s9, 1
    %p77 = por %p75, %p76
    %p78 = scmp.ne.s32.totalorder %s70, %s73
    %p79 = scmp.eq.s32.totalorder %s9, 0
    %p80 = por %p78, %p79
    %p81 = scmp.ne.s32.totalorder %s70, %s73
    %p82 = scmp.eq.s32.totalorder %s14, 1
    %p83 = por %p81, %p82
    %p84 = scmp.ne.s32.totalorder %s73, %s74
    %p85 = scmp.eq.s32.totalorder %s14, 0
    %p86 = por %p84, %p85
    %p87 = scmp.ne.s32.totalorder %s73, %s74
    %p88 = scmp.eq.s32.totalorder %s15, 1
    %p89 = por %p87, %p88
    %p91 = scmp.ne.s32.totalorder %s74, %s90
    %p92 = scmp.eq.s32.totalorder %s15, 0
    %p93 = por %p91, %p92
    %s94 = ssub.s32 %s17, %s31
    %s95 = ssub.s32 %s16, %s35
    %s96 = sor.u32 %s94, %s95
    %p97 = scmp.eq.s32.totalorder %s96, 0
    %s99 = sadd.s32 %s98, 1
    %s100 = scalar_select %p97, %s98, %s99
    %p103 = pneg %p97
    %p104 = scmp.eq.s32.totalorder %s9, 1
    %p105 = por %p103, %p104
    %p106 = scmp.ne.s32.totalorder %s98, %s101
    %p107 = scmp.eq.s32.totalorder %s9, 0
    %p108 = por %p106, %p107
    %p109 = scmp.ne.s32.totalorder %s98, %s101
    %p110 = scmp.eq.s32.totalorder %s14, 1
    %p111 = por %p109, %p110
    %p112 = scmp.ne.s32.totalorder %s101, %s102
    %p113 = scmp.eq.s32.totalorder %s14, 0
    %p114 = por %p112, %p113
    %p115 = scmp.ne.s32.totalorder %s101, %s102
    %p116 = scmp.eq.s32.totalorder %s15, 1
    %p117 = por %p115, %p116
    %p119 = scmp.ne.s32.totalorder %s102, %s118
    %p120 = scmp.eq.s32.totalorder %s15, 0
    %p121 = por %p119, %p120
    %p122 = scmp.le.s32.totalorder 1, %s9
    %p123 = scmp.lt.s32.totalorder %s9, 3
    %p124 = pnand %p122, %p123
    %p125 = pneg %p124
    // Predicated region
    $region9: #{inplace_abn_forward.2} parent=5 // pred_check
      _
    $region10: #{inplace_abn_forward.2} parent=5 // pred_check_branch
      %127 = sbr.rel (%p124) target = $region12
    $region11: #{inplace_abn_forward.2} parent=5 // pred_region
      %s128 = ssub.s32 %s9, 1
    $region12: #{inplace_abn_forward.2} parent=5 // pred_fallthru
      _
    %p129 = scmp.lt.s32.totalorder %s9, 2
    // Predicated region
    $region13: #{inplace_abn_forward.2} parent=5 // pred_check
      %p130 = pneg %p129
    $region14: #{inplace_abn_forward.2} parent=5 // pred_check_branch
      %132 = sbr.rel (%p130) target = $region16
    $region15: #{inplace_abn_forward.2} parent=5 // pred_region
      // Predicated region
      $region17: #{inplace_abn_forward.2} parent=15 // pred_check
        %p133 = pneg %p52
      $region18: #{inplace_abn_forward.2} parent=15 // pred_check_branch
        %135 = sbr.rel (%p133) target = $region20
      $region19: #{inplace_abn_forward.2} parent=15 // pred_region
        %s136 = smul.u32 2, %s18
        %p137 = scmp.lt.s32.totalorder %s17, 1
        %s138 = scalar_select %p137, %s17, 1
        %p139 = scmp.lt.s32.totalorder %s16, 0
        %s140 = scalar_select %p139, %s16, 0
        %p141 = scmp.lt.s32.totalorder %s136, 1
        %s142 = scalar_select %p141, %s136, 1
        %s143 = smul.addr %s140, 2
        %s144 = sadd.s32 %s142, %s143
        %s145 = smul.addr %s138, 2
        %s146 = sadd.s32 %s144, %s145
        %s147 = smul.addr %s146, 4
        %s148 = scalar_lea.vmem %s0, %s147
        %s149 = smul.u32 2, %s18
      $region20: #{inplace_abn_forward.2} parent=15 // pred_fallthru
        _
    $region16: #{inplace_abn_forward.2} parent=5 // pred_fallthru
      _
    %p150 = scmp.le.s32.totalorder 1, %s9
    %p151 = scmp.lt.s32.totalorder %s9, 3
    %p152 = pnand %p150, %p151
    %p153 = pneg %p152
    // Predicated region
    $region21: #{inplace_abn_forward.2} parent=5 // pred_check
      _
    $region22: #{inplace_abn_forward.2} parent=5 // pred_check_branch
      %155 = sbr.rel (%p152) target = $region24
    $region23: #{inplace_abn_forward.2} parent=5 // pred_region
      %s156 = ssub.s32 %s9, 1
      %s157 = smul.u32 2, %s21
      %p158 = scmp.lt.s32.totalorder %s20, 1
      %s159 = scalar_select %p158, %s20, 1
      %p160 = scmp.lt.s32.totalorder %s19, 0
      %s161 = scalar_select %p160, %s19, 0
      %p162 = scmp.lt.s32.totalorder %s157, 1
      %s163 = scalar_select %p162, %s157, 1
      %s164 = smul.addr %s161, 2
      %s165 = sadd.s32 %s163, %s164
      %s166 = smul.addr %s159, 2
      %s167 = sadd.s32 %s165, %s166
      %s168 = smul.addr %s167, 4
      %s169 = scalar_lea.vmem %s0, %s168
      %p170 = pneg %p58
      %p171 = pneg %p55
      %p172 = pneg %p86
      %p173 = pneg %p83
      %p174 = scmp.lt.s32.totalorder %s20, 1
      %s175 = scalar_select %p174, %s20, 1
      %p176 = scmp.lt.s32.totalorder %s19, 0
      %s177 = scalar_select %p176, %s19, 0
      %s178 = sadd.s32 %s177, %s175
      %s179 = smul.addr %s178, 4
      %s180 = scalar_lea.vmem %s1, %s179
      %p181 = pneg %p114
      %p182 = pneg %p111
      %p183 = scmp.lt.s32.totalorder %s20, 1
      %s184 = scalar_select %p183, %s20, 1
      %p185 = scmp.lt.s32.totalorder %s19, 0
      %s186 = scalar_select %p185, %s19, 0
      %s187 = sadd.s32 %s186, %s184
      %s188 = smul.addr %s187, 4
      %s189 = scalar_lea.vmem %s2, %s188
      %s190 = smul.u32 2, %s21
      %p191 = scmp.lt.s32.totalorder %s20, 1
      %s192 = scalar_select %p191, %s20, 1
      %p193 = scmp.lt.s32.totalorder %s19, 0
      %s194 = scalar_select %p193, %s19, 0
      %p195 = scmp.lt.s32.totalorder %s190, 1
      %s196 = scalar_select %p195, %s190, 1
      %s197 = smul.addr %s194, 2
      %s198 = sadd.s32 %s196, %s197
      %s199 = smul.addr %s192, 2
      %s200 = sadd.s32 %s198, %s199
      %s201 = smul.addr %s200, 4
      %s202 = scalar_lea.vmem %s0, %s201
      %s203 = smul.u32 2, %s21
      %p204 = scmp.lt.s32.totalorder %s20, 1
      %s205 = scalar_select %p204, %s20, 1
      %p206 = scmp.lt.s32.totalorder %s19, 0
      %s207 = scalar_select %p206, %s19, 0
      %s208 = sadd.s32 %s207, %s205
      %s209 = smul.addr %s208, 4
      %s210 = scalar_lea.vmem %s1, %s209
      %p211 = scmp.lt.s32.totalorder %s20, 1
      %s212 = scalar_select %p211, %s20, 1
      %p213 = scmp.lt.s32.totalorder %s19, 0
      %s214 = scalar_select %p213, %s19, 0
      %s215 = sadd.s32 %s214, %s212
      %s216 = smul.addr %s215, 4
      %s217 = scalar_lea.vmem %s2, %s216
      %p218 = scmp.eq.s32.totalorder %s21, 0
      // Predicated region
      $region25: #{inplace_abn_forward.2} parent=23 // pred_check
        %p219 = pneg %p218
      $region26: #{inplace_abn_forward.2} parent=23 // pred_check_branch
        %221 = sbr.rel (%p219) target = $region28
      $region27: #{inplace_abn_forward.2} parent=23 // pred_region
        %222 = vst [vmem:[%s210] sm:$0xf] 0.0
        %223 = vst [vmem:[%s217] sm:$0xf] 0.0
      $region28: #{inplace_abn_forward.2} parent=23 // pred_fallthru
        _
      %v224 = vld [vmem:[%s202] sm:$0xf]
      %v225 = vadd.f32 %v224, 0.0
      %v226 = vmul.f32 %v224, %v224
      %v227 = vadd.f32 %v226, 0.0
      %v228 = vld [vmem:[%s202 + $0x4] sm:$0xf]
      %v229 = vadd.f32 %v225, %v228
      %v230 = vmul.f32 %v228, %v228
      %v231 = vadd.f32 %v227, %v230
      %v232 = vld [vmem:[%s210] sm:$0xf]
      %v233 = vadd.f32 %v232, %v229
      %234 = vst [vmem:[%s210] sm:$0xf] %v233
      %v235 = vld [vmem:[%s217] sm:$0xf]
      %v236 = vadd.f32 %v235, %v231
      %237 = vst [vmem:[%s217] sm:$0xf] %v236
      %p238 = scmp.lt.s32.totalorder %s20, 1
      %s239 = scalar_select %p238, %s20, 1
      %p240 = scmp.lt.s32.totalorder %s19, 0
      %s241 = scalar_select %p240, %s19, 0
      %s242 = sadd.s32 %s241, %s239
      %s243 = smul.addr %s242, 4
      %s244 = scalar_lea.vmem %s1, %s243
      %p245 = scmp.lt.s32.totalorder %s20, 1
      %s246 = scalar_select %p245, %s20, 1
      %p247 = scmp.lt.s32.totalorder %s19, 0
      %s248 = scalar_select %p247, %s19, 0
      %s249 = sadd.s32 %s248, %s246
      %s250 = smul.addr %s249, 4
      %s251 = scalar_lea.vmem %s2, %s250
      // Predicated region
      $region29: #{inplace_abn_forward.2} parent=23 // pred_check
        %p252 = pneg %p83
      $region30: #{inplace_abn_forward.2} parent=23 // pred_check_branch
        %254 = sbr.rel (%p252) target = $region32
      $region31: #{inplace_abn_forward.2} parent=23 // pred_region
        _
      $region32: #{inplace_abn_forward.2} parent=23 // pred_fallthru
        _
      // Predicated region
      $region33: #{inplace_abn_forward.2} parent=23 // pred_check
        %p255 = pneg %p111
      $region34: #{inplace_abn_forward.2} parent=23 // pred_check_branch
        %257 = sbr.rel (%p255) target = $region36
      $region35: #{inplace_abn_forward.2} parent=23 // pred_region
        _
      $region36: #{inplace_abn_forward.2} parent=23 // pred_fallthru
        _
    $region24: #{inplace_abn_forward.2} parent=5 // pred_fallthru
      _
    %p258 = scmp.le.s32.totalorder 2, %s9
    // Predicated region
    $region37: #{inplace_abn_forward.2} parent=5 // pred_check
      %p259 = pneg %p258
    $region38: #{inplace_abn_forward.2} parent=5 // pred_check_branch
      %261 = sbr.rel (%p259) target = $region40
    $region39: #{inplace_abn_forward.2} parent=5 // pred_region
      %s262 = ssub.s32 %s9, 2
      // Predicated region
      $region41: #{inplace_abn_forward.2} parent=39 // pred_check
        %p263 = pneg %p89
      $region42: #{inplace_abn_forward.2} parent=39 // pred_check_branch
        %265 = sbr.rel (%p263) target = $region44
      $region43: #{inplace_abn_forward.2} parent=39 // pred_region
        %p266 = scmp.lt.s32.totalorder %s23, 1
        %s267 = scalar_select %p266, %s23, 1
        %p268 = scmp.lt.s32.totalorder %s22, 0
        %s269 = scalar_select %p268, %s22, 0
        %s270 = sadd.s32 %s269, %s267
        %s271 = smul.addr %s270, 4
        %s272 = scalar_lea.vmem %s1, %s271
      $region44: #{inplace_abn_forward.2} parent=39 // pred_fallthru
        _
      // Predicated region
      $region45: #{inplace_abn_forward.2} parent=39 // pred_check
        %p273 = pneg %p117
      $region46: #{inplace_abn_forward.2} parent=39 // pred_check_branch
        %275 = sbr.rel (%p273) target = $region48
      $region47: #{inplace_abn_forward.2} parent=39 // pred_region
        %p276 = scmp.lt.s32.totalorder %s23, 1
        %s277 = scalar_select %p276, %s23, 1
        %p278 = scmp.lt.s32.totalorder %s22, 0
        %s279 = scalar_select %p278, %s22, 0
        %s280 = sadd.s32 %s279, %s277
        %s281 = smul.addr %s280, 4
        %s282 = scalar_lea.vmem %s2, %s281
      $region48: #{inplace_abn_forward.2} parent=39 // pred_fallthru
        _
    $region40: #{inplace_abn_forward.2} parent=5 // pred_fallthru
      _
  $region6: #{inplace_abn_forward.2} parent=0 // loop_footer
    %s13 = sadd.s32 1, %s9
  $region7: #{inplace_abn_forward.2} parent=0 // loop_footer_branch
    %8 = sbr.rel target = $region3
  $region8: #{inplace_abn_forward.2} parent=0 // loop_exit
    _

// kernel: inplace_abn_forward.3
$region0: #{inplace_abn_forward.3}
  #allocation0 [shape = 'u32[]', space=smem, size = 0x4, offset = 0x4, fixed_abs, tag = 'smem constant byte address 0x4 - core index']
  #allocation1 [shape = 'u32[144,128]{1,0:T(1,128)}', space=vmem, size = 0x12000, scoped, tag = 'internal scratch']
  %s0 = inlined_call_operand.vmem [shape: f32[2,4,256], index: 0, kind: input, shape index: {}, may-alias: {0,3}]
  %s1 = inlined_call_operand.vmem [shape: f32[4,1], index: 1, kind: input, shape index: {}]
  %s2 = inlined_call_operand.vmem [shape: f32[4,1], index: 2, kind: input, shape index: {}]
  %s3 = inlined_call_operand.vmem [shape: f32[2,4,256], index: 3, kind: output, shape index: {}, may-alias: {0,3}]
  %s4 = sld [smem:[#allocation0]]
  $region45: #{inplace_abn_forward.3} parent=0
    _
  %s6 = ssub.s32 1, %s4
  %s7 = scalar_select 0, %s6, %s4
  loop: start=0, step=1, limit=4
  $region2: #{inplace_abn_forward.3} parent=0 // loop_pre_header
    _
  $region3: #{inplace_abn_forward.3} parent=0 // loop_header
    %s9 = sphi 0, %s13
    %p10 = scmp.ge.s32.totalorder %s9, 4
    %s16 = sphi 0, %s35
    %s17 = sphi 0, %s31
    %s18 = sphi 0, %s27
    %s19 = sphi 0, %s16
    %s20 = sphi 0, %s17
    %s21 = sphi 0, %s18
    %s22 = sphi 0, %s19
    %s23 = sphi 0, %s20
    %s24 = sphi 0, %s21
    %s42 = sphi 0, %s44
    %s45 = sphi 0, %s42
    %s46 = sphi 0, %s45
    %s62 = sphi 0, %s46
    %s68 = sphi 0, %s70
    %s71 = sphi 0, %s68
    %s72 = sphi 0, %s71
    %s88 = sphi 0, %s72
    %s94 = sphi 0, %s96
    %s97 = sphi 0, %s94
    %s98 = sphi 0, %s97
    %s114 = sphi 0, %s98
    %s124 = sphi 0, %s126
    %s127 = sphi 0, %s124
    %s128 = sphi 0, %s127
    %s144 = sphi 0, %s128
  $region4: #{inplace_abn_forward.3} parent=0 // loop_header_branch
    %12 = sbr.rel (%p10) target = $region8
  $region5: #{inplace_abn_forward.3} parent=0 // loop_body
    %s14 = ssub.s32 %s9, 1
    %s15 = ssub.s32 %s9, 2
    %s25 = sadd.s32 1, %s18
    %p26 = scmp.ge.s32.totalorder %s25, 1
    %s27 = scalar_select %p26, 0, %s25
    %s28 = sadd.s32 1, %s17
    %s29 = scalar_select %p26, %s28, %s17
    %p30 = scmp.ge.s32.totalorder %s29, 2
    %s31 = scalar_select %p30, 0, %s29
    %s32 = sadd.s32 1, %s16
    %s33 = scalar_select %p30, %s32, %s16
    %p34 = scmp.ge.s32.totalorder %s33, 1
    %s35 = scalar_select %p34, 0, %s33
    %s36 = ssub.s32 %s17, %s31
    %s37 = ssub.s32 %s16, %s35
    %s38 = sor.u32 %s36, %s37
    %s39 = ssub.s32 %s18, %s27
    %s40 = sor.u32 %s38, %s39
    %p41 = scmp.eq.s32.totalorder %s40, 0
    %s43 = sadd.s32 %s42, 1
    %s44 = scalar_select %p41, %s42, %s43
    %p47 = pneg %p41
    %p48 = scmp.eq.s32.totalorder %s9, 1
    %p49 = por %p47, %p48
    %p50 = scmp.ne.s32.totalorder %s42, %s45
    %p51 = scmp.eq.s32.totalorder %s9, 0
    %p52 = por %p50, %p51
    %p53 = scmp.ne.s32.totalorder %s42, %s45
    %p54 = scmp.eq.s32.totalorder %s14, 1
    %p55 = por %p53, %p54
    %p56 = scmp.ne.s32.totalorder %s45, %s46
    %p57 = scmp.eq.s32.totalorder %s14, 0
    %p58 = por %p56, %p57
    %p59 = scmp.ne.s32.totalorder %s45, %s46
    %p60 = scmp.eq.s32.totalorder %s15, 1
    %p61 = por %p59, %p60
    %p63 = scmp.ne.s32.totalorder %s46, %s62
    %p64 = scmp.eq.s32.totalorder %s15, 0
    %p65 = por %p63, %p64
    %s66 = ssub.s32 %s16, %s35
    %p67 = scmp.eq.s32.totalorder %s66, 0
    %s69 = sadd.s32 %s68, 1
    %s70 = scalar_select %p67, %s68, %s69
    %p73 = pneg %p67
    %p74 = scmp.eq.s32.totalorder %s9, 1
    %p75 = por %p73, %p74
    %p76 = scmp.ne.s32.totalorder %s68, %s71
    %p77 = scmp.eq.s32.totalorder %s9, 0
    %p78 = por %p76, %p77
    %p79 = scmp.ne.s32.totalorder %s68, %s71
    %p80 = scmp.eq.s32.totalorder %s14, 1
    %p81 = por %p79, %p80
    %p82 = scmp.ne.s32.totalorder %s71, %s72
    %p83 = scmp.eq.s32.totalorder %s14, 0
    %p84 = por %p82, %p83
    %p85 = scmp.ne.s32.totalorder %s71, %s72
    %p86 = scmp.eq.s32.totalorder %s15, 1
    %p87 = por %p85, %p86
    %p89 = scmp.ne.s32.totalorder %s72, %s88
    %p90 = scmp.eq.s32.totalorder %s15, 0
    %p91 = por %p89, %p90
    %s92 = ssub.s32 %s16, %s35
    %p93 = scmp.eq.s32.totalorder %s92, 0
    %s95 = sadd.s32 %s94, 1
    %s96 = scalar_select %p93, %s94, %s95
    %p99 = pneg %p93
    %p100 = scmp.eq.s32.totalorder %s9, 1
    %p101 = por %p99, %p100
    %p102 = scmp.ne.s32.totalorder %s94, %s97
    %p103 = scmp.eq.s32.totalorder %s9, 0
    %p104 = por %p102, %p103
    %p105 = scmp.ne.s32.totalorder %s94, %s97
    %p106 = scmp.eq.s32.totalorder %s14, 1
    %p107 = por %p105, %p106
    %p108 = scmp.ne.s32.totalorder %s97, %s98
    %p109 = scmp.eq.s32.totalorder %s14, 0
    %p110 = por %p108, %p109
    %p111 = scmp.ne.s32.totalorder %s97, %s98
    %p112 = scmp.eq.s32.totalorder %s15, 1
    %p113 = por %p111, %p112
    %p115 = scmp.ne.s32.totalorder %s98, %s114
    %p116 = scmp.eq.s32.totalorder %s15, 0
    %p117 = por %p115, %p116
    %s118 = ssub.s32 %s17, %s31
    %s119 = ssub.s32 %s16, %s35
    %s120 = sor.u32 %s118, %s119
    %s121 = ssub.s32 %s18, %s27
    %s122 = sor.u32 %s120, %s121
    %p123 = scmp.eq.s32.totalorder %s122, 0
    %s125 = sadd.s32 %s124, 1
    %s126 = scalar_select %p123, %s124, %s125
    %p129 = pneg %p123
    %p130 = scmp.eq.s32.totalorder %s9, 1
    %p131 = por %p129, %p130
    %p132 = scmp.ne.s32.totalorder %s124, %s127
    %p133 = scmp.eq.s32.totalorder %s9, 0
    %p134 = por %p132, %p133
    %p135 = scmp.ne.s32.totalorder %s124, %s127
    %p136 = scmp.eq.s32.totalorder %s14, 1
    %p137 = por %p135, %p136
    %p138 = scmp.ne.s32.totalorder %s127, %s128
    %p139 = scmp.eq.s32.totalorder %s14, 0
    %p140 = por %p138, %p139
    %p141 = scmp.ne.s32.totalorder %s127, %s128
    %p142 = scmp.eq.s32.totalorder %s15, 1
    %p143 = por %p141, %p142
    %p145 = scmp.ne.s32.totalorder %s128, %s144
    %p146 = scmp.eq.s32.totalorder %s15, 0
    %p147 = por %p145, %p146
    %p148 = scmp.le.s32.totalorder 1, %s9
    %p149 = scmp.lt.s32.totalorder %s9, 3
    %p150 = pnand %p148, %p149
    %p151 = pneg %p150
    // Predicated region
    $region9: #{inplace_abn_forward.3} parent=5 // pred_check
      _
    $region10: #{inplace_abn_forward.3} parent=5 // pred_check_branch
      %153 = sbr.rel (%p150) target = $region12
    $region11: #{inplace_abn_forward.3} parent=5 // pred_region
      %s154 = ssub.s32 %s9, 1
      // Predicated region
      $region13: #{inplace_abn_forward.3} parent=11 // pred_check
        %p155 = pneg %p84
      $region14: #{inplace_abn_forward.3} parent=11 // pred_check_branch
        %157 = sbr.rel (%p155) target = $region16
      $region15: #{inplace_abn_forward.3} parent=11 // pred_region
        %p158 = scmp.lt.s32.totalorder %s19, 0
        %s159 = scalar_select %p158, %s19, 0
        %s160 = smul.addr %s159, 4
        %s161 = scalar_lea.vmem %s1, %s160
      $region16: #{inplace_abn_forward.3} parent=11 // pred_fallthru
        _
      // Predicated region
      $region17: #{inplace_abn_forward.3} parent=11 // pred_check
        %p162 = pneg %p110
      $region18: #{inplace_abn_forward.3} parent=11 // pred_check_branch
        %164 = sbr.rel (%p162) target = $region20
      $region19: #{inplace_abn_forward.3} parent=11 // pred_region
        %p165 = scmp.lt.s32.totalorder %s19, 0
        %s166 = scalar_select %p165, %s19, 0
        %s167 = smul.addr %s166, 4
        %s168 = scalar_lea.vmem %s2, %s167
      $region20: #{inplace_abn_forward.3} parent=11 // pred_fallthru
        _
    $region12: #{inplace_abn_forward.3} parent=5 // pred_fallthru
      _
    %p169 = scmp.lt.s32.totalorder %s9, 2
    // Predicated region
    $region21: #{inplace_abn_forward.3} parent=5 // pred_check
      %p170 = pneg %p169
    $region22: #{inplace_abn_forward.3} parent=5 // pred_check_branch
      %172 = sbr.rel (%p170) target = $region24
    $region23: #{inplace_abn_forward.3} parent=5 // pred_region
      // Predicated region
      $region25: #{inplace_abn_forward.3} parent=23 // pred_check
        %p173 = pneg %p52
      $region26: #{inplace_abn_forward.3} parent=23 // pred_check_branch
        %175 = sbr.rel (%p173) target = $region28
      $region27: #{inplace_abn_forward.3} parent=23 // pred_region
        %s176 = smul.u32 2, %s18
        %p177 = scmp.lt.s32.totalorder %s17, 1
        %s178 = scalar_select %p177, %s17, 1
        %p179 = scmp.lt.s32.totalorder %s16, 0
        %s180 = scalar_select %p179, %s16, 0
        %p181 = scmp.lt.s32.totalorder %s176, 1
        %s182 = scalar_select %p181, %s176, 1
        %s183 = smul.addr %s180, 2
        %s184 = sadd.s32 %s182, %s183
        %s185 = smul.addr %s178, 2
        %s186 = sadd.s32 %s184, %s185
        %s187 = smul.addr %s186, 4
        %s188 = scalar_lea.vmem %s0, %s187
        %s189 = smul.u32 2, %s18
      $region28: #{inplace_abn_forward.3} parent=23 // pred_fallthru
        _
    $region24: #{inplace_abn_forward.3} parent=5 // pred_fallthru
      _
    %p190 = scmp.le.s32.totalorder 1, %s9
    %p191 = scmp.lt.s32.totalorder %s9, 3
    %p192 = pnand %p190, %p191
    %p193 = pneg %p192
    // Predicated region
    $region29: #{inplace_abn_forward.3} parent=5 // pred_check
      _
    $region30: #{inplace_abn_forward.3} parent=5 // pred_check_branch
      %195 = sbr.rel (%p192) target = $region32
    $region31: #{inplace_abn_forward.3} parent=5 // pred_region
      %s196 = ssub.s32 %s9, 1
      %s197 = smul.u32 2, %s21
      %p198 = scmp.lt.s32.totalorder %s20, 1
      %s199 = scalar_select %p198, %s20, 1
      %p200 = scmp.lt.s32.totalorder %s19, 0
      %s201 = scalar_select %p200, %s19, 0
      %p202 = scmp.lt.s32.totalorder %s197, 1
      %s203 = scalar_select %p202, %s197, 1
      %s204 = smul.addr %s201, 2
      %s205 = sadd.s32 %s203, %s204
      %s206 = smul.addr %s199, 2
      %s207 = sadd.s32 %s205, %s206
      %s208 = smul.addr %s207, 4
      %s209 = scalar_lea.vmem %s0, %s208
      %p210 = pneg %p58
      %p211 = pneg %p55
      %p212 = scmp.lt.s32.totalorder %s19, 0
      %s213 = scalar_select %p212, %s19, 0
      %s214 = smul.addr %s213, 4
      %s215 = scalar_lea.vmem %s1, %s214
      %p216 = pneg %p84
      %p217 = pneg %p81
      %p218 = scmp.lt.s32.totalorder %s19, 0
      %s219 = scalar_select %p218, %s19, 0
      %s220 = smul.addr %s219, 4
      %s221 = scalar_lea.vmem %s2, %s220
      %p222 = pneg %p110
      %p223 = pneg %p107
      %p224 = pneg %p140
      %p225 = pneg %p137
      %s226 = smul.u32 2, %s21
      %p227 = scmp.lt.s32.totalorder %s20, 1
      %s228 = scalar_select %p227, %s20, 1
      %p229 = scmp.lt.s32.totalorder %s19, 0
      %s230 = scalar_select %p229, %s19, 0
      %p231 = scmp.lt.s32.totalorder %s226, 1
      %s232 = scalar_select %p231, %s226, 1
      %s233 = smul.addr %s230, 2
      %s234 = sadd.s32 %s232, %s233
      %s235 = smul.addr %s228, 2
      %s236 = sadd.s32 %s234, %s235
      %s237 = smul.addr %s236, 4
      %s238 = scalar_lea.vmem %s3, %s237
      %s239 = smul.u32 2, %s21
      %p240 = scmp.lt.s32.totalorder %s20, 1
      %s241 = scalar_select %p240, %s20, 1
      %p242 = scmp.lt.s32.totalorder %s19, 0
      %s243 = scalar_select %p242, %s19, 0
      %p244 = scmp.lt.s32.totalorder %s239, 1
      %s245 = scalar_select %p244, %s239, 1
      %s246 = smul.addr %s243, 2
      %s247 = sadd.s32 %s245, %s246
      %s248 = smul.addr %s241, 2
      %s249 = sadd.s32 %s247, %s248
      %s250 = smul.addr %s249, 4
      %s251 = scalar_lea.vmem %s0, %s250
      %s252 = smul.u32 2, %s21
      %p253 = scmp.lt.s32.totalorder %s19, 0
      %s254 = scalar_select %p253, %s19, 0
      %s255 = smul.addr %s254, 4
      %s256 = scalar_lea.vmem %s1, %s255
      %p257 = scmp.lt.s32.totalorder %s19, 0
      %s258 = scalar_select %p257, %s19, 0
      %s259 = smul.addr %s258, 4
      %s260 = scalar_lea.vmem %s2, %s259
      %s261 = smul.u32 2, %s21
      %p262 = scmp.lt.s32.totalorder %s20, 1
      %s263 = scalar_select %p262, %s20, 1
      %p264 = scmp.lt.s32.totalorder %s19, 0
      %s265 = scalar_select %p264, %s19, 0
      %p266 = scmp.lt.s32.totalorder %s261, 1
      %s267 = scalar_select %p266, %s261, 1
      %s268 = smul.addr %s265, 2
      %s269 = sadd.s32 %s267, %s268
      %s270 = smul.addr %s263, 2
      %s271 = sadd.s32 %s269, %s270
      %s272 = smul.addr %s271, 4
      %s273 = scalar_lea.vmem %s3, %s272
      %s274 = smul.u32 2, %s21
      %v275 = vld [vmem:[%s251] sm:$0xff]
      %v276 = vld [vmem:[%s256] sm:$0xf]
      %278 = vset.pattern.permute.xlu0 0
      %279 = vperm.xlu0 %278, %v276
      %v280 = vpop.permute.xlu0 %279
      %v282 = vunpack.c.l.s4 839922192
      %v283 = vunpack.c.0.s8 %v282
      %v284 = vlaneseq
      %v285 = vshrl.u32 %v284, 7
      %v286 = vsub.s32 %v283, %v285
      %v287 = vrot.slane %v280, %v286
      %v289 = vmul.f32 %v275, %v287
      %v290 = vld [vmem:[%s260] sm:$0xf]
      %292 = vset.pattern.permute.xlu0 0
      %293 = vperm.xlu0 %292, %v290
      %v294 = vpop.permute.xlu0 %293
      %v296 = vunpack.c.l.s4 839922192
      %v297 = vunpack.c.0.s8 %v296
      %v298 = vlaneseq
      %v299 = vshrl.u32 %v298, 7
      %v300 = vsub.s32 %v297, %v299
      %v301 = vrot.slane %v294, %v300
      %v303 = vadd.f32 %v289, %v301
      %v304 = vmul.f32 %v303, 0.01
      %v305 = vmax.f32 %v303, %v304
      %306 = vst [vmem:[%s273] sm:$0xff] %v305
      %s307 = smul.u32 2, %s21
      %p308 = scmp.lt.s32.totalorder %s20, 1
      %s309 = scalar_select %p308, %s20, 1
      %p310 = scmp.lt.s32.totalorder %s19, 0
      %s311 = scalar_select %p310, %s19, 0
      %p312 = scmp.lt.s32.totalorder %s307, 1
      %s313 = scalar_select %p312, %s307, 1
      %s314 = smul.addr %s311, 2
      %s315 = sadd.s32 %s313, %s314
      %s316 = smul.addr %s309, 2
      %s317 = sadd.s32 %s315, %s316
      %s318 = smul.addr %s317, 4
      %s319 = scalar_lea.vmem %s3, %s318
      // Predicated region
      $region33: #{inplace_abn_forward.3} parent=31 // pred_check
        %p320 = pneg %p137
      $region34: #{inplace_abn_forward.3} parent=31 // pred_check_branch
        %322 = sbr.rel (%p320) target = $region36
      $region35: #{inplace_abn_forward.3} parent=31 // pred_region
        %s323 = smul.u32 2, %s21
      $region36: #{inplace_abn_forward.3} parent=31 // pred_fallthru
        _
    $region32: #{inplace_abn_forward.3} parent=5 // pred_fallthru
      _
    %p324 = scmp.le.s32.totalorder 2, %s9
    // Predicated region
    $region37: #{inplace_abn_forward.3} parent=5 // pred_check
      %p325 = pneg %p324
    $region38: #{inplace_abn_forward.3} parent=5 // pred_check_branch
      %327 = sbr.rel (%p325) target = $region40
    $region39: #{inplace_abn_forward.3} parent=5 // pred_region
      %s328 = ssub.s32 %s9, 2
      // Predicated region
      $region41: #{inplace_abn_forward.3} parent=39 // pred_check
        %p329 = pneg %p143
      $region42: #{inplace_abn_forward.3} parent=39 // pred_check_branch
        %331 = sbr.rel (%p329) target = $region44
      $region43: #{inplace_abn_forward.3} parent=39 // pred_region
        %s332 = smul.u32 2, %s24
        %p333 = scmp.lt.s32.totalorder %s23, 1
        %s334 = scalar_select %p333, %s23, 1
        %p335 = scmp.lt.s32.totalorder %s22, 0
        %s336 = scalar_select %p335, %s22, 0
        %p337 = scmp.lt.s32.totalorder %s332, 1
        %s338 = scalar_select %p337, %s332, 1
        %s339 = smul.addr %s336, 2
        %s340 = sadd.s32 %s338, %s339
        %s341 = smul.addr %s334, 2
        %s342 = sadd.s32 %s340, %s341
        %s343 = smul.addr %s342, 4
        %s344 = scalar_lea.vmem %s3, %s343
      $region44: #{inplace_abn_forward.3} parent=39 // pred_fallthru
        _
    $region40: #{inplace_abn_forward.3} parent=5 // pred_fallthru
      _
  $region6: #{inplace_abn_forward.3} parent=0 // loop_footer
    %s13 = sadd.s32 1, %s9
  $region7: #{inplace_abn_forward.3} parent=0 // loop_footer_branch
    %8 = sbr.rel target = $region3
  $region8: #{inplace_abn_forward.3} parent=0 // loop_exit
    _

</llo_original>
